<compile_context>
chip_gen: v5e
topology: v5e:2x2
jax: 0.10.0
libtpu: 0.0.40
codegen_flags: <defaults>
</compile_context>

<pallas_src>
import functools
import math

import jax
import jax.numpy as jnp
from jax.experimental import pallas as pl
from jax.experimental.pallas import tpu as pltpu

LANE = 128
SUBLANE = 8
NEG_SLOPE = 0.2
BN_EPS = 1e-5
MAX_TILE_M = 512


def _round_up(x, m):
    return (x + m - 1) // m * m


def _compiler_params():
    return pltpu.CompilerParams(
        dimension_semantics=("parallel",),
        vmem_limit_bytes=32 * 1024 * 1024,
    )


def _pick_tile(M):
    if M <= MAX_TILE_M:
        return _round_up(M, SUBLANE)
    return MAX_TILE_M


def _pad_rows(patches, tm):
    M = patches.shape[0]
    M_pad = _round_up(M, tm)
    if M_pad != M:
        patches = jnp.pad(patches, ((0, M_pad - M), (0, 0)))
    return patches, M_pad


# ----------------------------------------------------------------------------
# Pallas kernels
# ----------------------------------------------------------------------------
def _mm_lrelu_kernel(x_ref, w_ref, o_ref):
    """conv-as-matmul + LeakyReLU(0.2) (no BN)."""
    y = jnp.dot(x_ref[...], w_ref[...], preferred_element_type=jnp.float32)
    y = jnp.where(y > 0, y, NEG_SLOPE * y)
    o_ref[...] = y.astype(o_ref.dtype)


def _mm_stats_kernel(x_ref, w_ref, y_ref, sum_ref, sq_ref):
    """conv-as-matmul + per-tile partial channel sums for BN batch stats."""
    y = jnp.dot(x_ref[...], w_ref[...], preferred_element_type=jnp.float32)
    y_ref[...] = y.astype(y_ref.dtype)
    tm, c = y.shape
    yg = y.reshape(SUBLANE, tm // SUBLANE, c)       # 8 row-groups per tile
    sum_ref[...] = jnp.sum(yg, axis=1)              # [8, Cpad]
    sq_ref[...] = jnp.sum(yg * yg, axis=1)          # [8, Cpad]


def _bn_lrelu_kernel(y_ref, scale_ref, shift_ref, o_ref):
    """apply per-channel (y*scale + shift) + LeakyReLU(0.2) in f32."""
    y = y_ref[...].astype(jnp.float32)
    y = y * scale_ref[...] + shift_ref[...]
    y = jnp.where(y > 0, y, NEG_SLOPE * y)
    o_ref[...] = y.astype(o_ref.dtype)


# ----------------------------------------------------------------------------
# Pallas-call wrappers (tiled over M)
# ----------------------------------------------------------------------------
def conv_lrelu(patches, w_mat):
    M, K = patches.shape
    Cpad = w_mat.shape[1]
    tm = _pick_tile(M)
    patches, M_pad = _pad_rows(patches, tm)
    nt = M_pad // tm

    out = pl.pallas_call(
        _mm_lrelu_kernel,
        out_shape=jax.ShapeDtypeStruct((M_pad, Cpad), jnp.bfloat16),
        grid=(nt,),
        in_specs=[
            pl.BlockSpec((tm, K), lambda i: (i, 0)),
            pl.BlockSpec((K, Cpad), lambda i: (0, 0)),
        ],
        out_specs=pl.BlockSpec((tm, Cpad), lambda i: (i, 0)),
        compiler_params=_compiler_params(),
    )(patches, w_mat)
    return out[:M]


def conv_bn_lrelu(patches, w_mat):
    M, K = patches.shape
    Cpad = w_mat.shape[1]
    tm = _pick_tile(M)
    patches, M_pad = _pad_rows(patches, tm)
    nt = M_pad // tm

    # Pass 1: tiled matmul + per-tile partial sums / sums-of-squares.
    y, sums, sqs = pl.pallas_call(
        _mm_stats_kernel,
        out_shape=(
            jax.ShapeDtypeStruct((M_pad, Cpad), jnp.bfloat16),
            jax.ShapeDtypeStruct((nt * SUBLANE, Cpad), jnp.float32),
            jax.ShapeDtypeStruct((nt * SUBLANE, Cpad), jnp.float32),
        ),
        grid=(nt,),
        in_specs=[
            pl.BlockSpec((tm, K), lambda i: (i, 0)),
            pl.BlockSpec((K, Cpad), lambda i: (0, 0)),
        ],
        out_specs=(
            pl.BlockSpec((tm, Cpad), lambda i: (i, 0)),
            pl.BlockSpec((SUBLANE, Cpad), lambda i: (i, 0)),
            pl.BlockSpec((SUBLANE, Cpad), lambda i: (i, 0)),
        ),
        compiler_params=_compiler_params(),
    )(patches, w_mat)

    # Finish batch stats in f32 (tiny XLA reduction).  Zero-padded rows of the
    # patches contribute exactly zero, so dividing by the real M is correct.
    inv_m = 1.0 / float(M)
    mean = jnp.sum(sums, axis=0, keepdims=True) * inv_m             # [1, Cpad]
    var = jnp.sum(sqs, axis=0, keepdims=True) * inv_m - mean * mean
    scale = jax.lax.rsqrt(var + BN_EPS)
    shift = -mean * scale

    # Pass 2: tiled normalize + LeakyReLU.
    out = pl.pallas_call(
        _bn_lrelu_kernel,
        out_shape=jax.ShapeDtypeStruct((M_pad, Cpad), jnp.bfloat16),
        grid=(nt,),
        in_specs=[
            pl.BlockSpec((tm, Cpad), lambda i: (i, 0)),
            pl.BlockSpec((1, Cpad), lambda i: (0, 0)),
            pl.BlockSpec((1, Cpad), lambda i: (0, 0)),
        ],
        out_specs=pl.BlockSpec((tm, Cpad), lambda i: (i, 0)),
        compiler_params=_compiler_params(),
    )(y, scale, shift)
    return out[:M]


# ----------------------------------------------------------------------------
# Plain-JAX glue: im2col (bf16) + weight preparation
# ----------------------------------------------------------------------------
def im2col(x_nhwc, ks, stride, pad):
    """Extract conv patches. Returns ([N*OH*OW, ks*ks*C] bf16, (N, OH, OW))."""
    x = jnp.pad(x_nhwc, ((0, 0), (pad, pad), (pad, pad), (0, 0)))
    N, H, W, C = x.shape
    OH = (H - ks) // stride + 1
    OW = (W - ks) // stride + 1
    cols = []
    for di in range(ks):
        for dj in range(ks):
            cols.append(x[:, di:di + stride * OH:stride,
                          dj:dj + stride * OW:stride, :])
    p = jnp.stack(cols, axis=3)        # [N, OH, OW, ks*ks, C] ordered (kh,kw,cin)
    return p.reshape(N * OH * OW, ks * ks * C), (N, OH, OW)


def init_dcgan_d_params(key, sz, nc, ndf):
    """Conv weights, normal(0, 0.02), same shapes as the PyTorch module."""
    assert sz > 4 and (sz & (sz - 1)) == 0
    n_mid = int(math.log2(sz)) - 3
    shapes = [(ndf, nc, 4, 4)]
    cur = ndf
    for _ in range(n_mid):
        shapes.append((cur * 2, cur, 4, 4))
        cur *= 2
    shapes.append((1, cur, 4, 4))              # final 4x4 s=1 p=0 conv
    keys = jax.random.split(key, len(shapes))
    return [0.02 * jax.random.normal(k, s, dtype=jnp.float32)
            for k, s in zip(keys, shapes)]


def prepare_params(params):
    """Precompute DMA-ready kernel weights: [K, Cpad] bf16 (Cpad = mult of 128)."""
    w_mats, couts = [], []
    for w in params[:-1]:
        cout = w.shape[0]
        cpad = max(LANE, _round_up(cout, LANE))
        m = jnp.transpose(w, (2, 3, 1, 0)).reshape(-1, cout)   # (kh,kw,cin) x cout
        m = jnp.pad(m, ((0, 0), (0, cpad - cout)))
        w_mats.append(m.astype(jnp.bfloat16))
        couts.append(cout)
    w_last = jnp.transpose(params[-1], (2, 3, 1, 0)).reshape(-1, 1)
    return tuple(w_mats), tuple(couts), w_last.astype(jnp.float32)


# ----------------------------------------------------------------------------
# Forward (matches DCGAN_D.forward, default batchnorm config, training stats)
# ----------------------------------------------------------------------------
@functools.partial(jax.jit, static_argnames=("couts", "use_sigmoid"))
def dcgan_d_forward(x_nchw, w_mats, w_last, couts, use_sigmoid=True):
    x = jnp.transpose(x_nchw, (0, 2, 3, 1)).astype(jnp.bfloat16)   # NCHW -> NHWC

    # Layer 0: Conv(4, s=2, p=1) + LeakyReLU(0.2)  (no BN)
    p, (N, OH, OW) = im2col(x, ks=4, stride=2, pad=1)
    y = conv_lrelu(p, w_mats[0])
    x = y[:, :couts[0]].reshape(N, OH, OW, couts[0])

    # Middle blocks: Conv(4, s=2, p=1) + BatchNorm(batch stats) + LeakyReLU
    for w_mat, cout in zip(w_mats[1:], couts[1:]):
        p, (N, OH, OW) = im2col(x, ks=4, stride=2, pad=1)
        y = conv_bn_lrelu(p, w_mat)
        x = y[:, :cout].reshape(N, OH, OW, cout)

    # Final Conv(4, s=1, p=0) -> [N, 1, 1, 1]; tiny 1-wide output, plain XLA.
    xf = x.reshape(N, -1).astype(jnp.float32)            # (h, w, c) = (kh, kw, cin)
    logits = jnp.dot(xf, w_last, preferred_element_type=jnp.float32)
    if use_sigmoid:
        logits = jax.nn.sigmoid(logits)
    return logits.reshape(N, 1, 1, 1)


if __name__ == "__main__":
    # Small config consistent with the module: sz=16 (power of 2, > 4),
    # nc=4 channels, ndf=8 base filters, batch=2.
    sz, nc, ndf, batch = 16, 4, 8, 2

    key = jax.random.PRNGKey(0)
    k_x, k_w = jax.random.split(key)
    x = jax.random.normal(k_x, (batch, nc, sz, sz), dtype=jnp.float32)
    params = init_dcgan_d_params(k_w, sz, nc, ndf)
    w_mats, couts, w_last = prepare_params(params)

    out = dcgan_d_forward(x, w_mats, w_last, couts, use_sigmoid=True)
    out = jax.block_until_ready(out)

    assert out.shape == (batch, 1, 1, 1), out.shape
    assert bool(jnp.all(jnp.isfinite(out)))
    assert bool(jnp.all((out >= 0.0) & (out <= 1.0)))   # sigmoid range
    print("KERNEL_OK")
</pallas_src>

<mosaic_0001>
module attributes {stable_mosaic.version = 11 : i64} {
  func.func @_mm_lrelu_kernel(%arg0: i32, %arg1: memref<128x64xbf16, #tpu.memory_space<vmem>>, %arg2: memref<64x128xbf16, #tpu.memory_space<vmem>>, %arg3: memref<128x128xbf16, #tpu.memory_space<vmem>>) attributes {dimension_semantics = [#tpu.dimension_semantics<parallel>], iteration_bounds = array<i64: 1>, scalar_prefetch = 0 : i64, scratch_operands = 0 : i64, tpu.core_type = #tpu.core_type<tc>, window_params = [{transform_indices = @transform_0, window_bounds = array<i64: 128, 64>}, {pipeline_mode = #tpu.pipeline_mode<synchronous>, transform_indices = @transform_1, window_bounds = array<i64: 64, 128>}, {transform_indices = @transform_2, window_bounds = array<i64: 128, 128>}]} {
    %c0 = arith.constant 0 : index
    %c0_0 = arith.constant 0 : index
    %0 = vector.load %arg1[%c0, %c0_0] : memref<128x64xbf16, #tpu.memory_space<vmem>>, vector<128x64xbf16>
    %c0_1 = arith.constant 0 : index
    %c0_2 = arith.constant 0 : index
    %1 = vector.load %arg2[%c0_1, %c0_2] : memref<64x128xbf16, #tpu.memory_space<vmem>>, vector<64x128xbf16>
    %cst = arith.constant dense<0.000000e+00> : vector<128x128xf32>
    %2 = tpu.matmul %0, %1, %cst {dimension_numbers = #tpu.dot_dimension_numbers<[1], [0], [0], [1], [0, 0, 1, 1], [], []>} : vector<128x64xbf16>, vector<64x128xbf16>, vector<128x128xf32> -> vector<128x128xf32>
    %cst_3 = arith.constant 0.000000e+00 : f32
    %3 = vector.broadcast %cst_3 : f32 to vector<128x128xf32>
    %4 = arith.cmpf ogt, %2, %3 : vector<128x128xf32>
    %cst_4 = arith.constant 2.000000e-01 : f32
    %5 = vector.broadcast %cst_4 : f32 to vector<128x128xf32>
    %6 = arith.mulf %5, %2 : vector<128x128xf32>
    %7 = arith.select %4, %2, %6 : vector<128x128xi1>, vector<128x128xf32>
    %8 = arith.truncf %7 : vector<128x128xf32> to vector<128x128xbf16>
    %c0_5 = arith.constant 0 : index
    %c0_6 = arith.constant 0 : index
    %9 = vector.load %arg3[%c0_5, %c0_6] : memref<128x128xbf16, #tpu.memory_space<vmem>>, vector<128x128xbf16>
    tpu.vector_store %arg3[%c0_5, %c0_6], %8 {strides = array<i32>} : memref<128x128xbf16, #tpu.memory_space<vmem>>, vector<128x128xbf16>,
    return
  }
  func.func @transform_0(%arg0: i32) -> (i32, i32) {
    %c0_i32 = arith.constant 0 : i32
    %c0_i32_0 = arith.constant 0 : i32
    return %arg0, %c0_i32 : i32, i32
  }
  func.func @transform_1(%arg0: i32) -> (i32, i32) {
    %c0_i32 = arith.constant 0 : i32
    %c0_i32_0 = arith.constant 0 : i32
    %c0_i32_1 = arith.constant 0 : i32
    return %c0_i32, %c0_i32_0 : i32, i32
  }
  func.func @transform_2(%arg0: i32) -> (i32, i32) {
    %c0_i32 = arith.constant 0 : i32
    %c0_i32_0 = arith.constant 0 : i32
    return %arg0, %c0_i32 : i32, i32
  }
}

module attributes {stable_mosaic.version = 11 : i64} {
  func.func @_mm_stats_kernel(%arg0: i32, %arg1: memref<32x128xbf16, #tpu.memory_space<vmem>>, %arg2: memref<128x128xbf16, #tpu.memory_space<vmem>>, %arg3: memref<32x128xbf16, #tpu.memory_space<vmem>>, %arg4: memref<8x128xf32, #tpu.memory_space<vmem>>, %arg5: memref<8x128xf32, #tpu.memory_space<vmem>>) attributes {dimension_semantics = [#tpu.dimension_semantics<parallel>], iteration_bounds = array<i64: 1>, scalar_prefetch = 0 : i64, scratch_operands = 0 : i64, tpu.core_type = #tpu.core_type<tc>, window_params = [{transform_indices = @transform_0, window_bounds = array<i64: 32, 128>}, {pipeline_mode = #tpu.pipeline_mode<synchronous>, transform_indices = @transform_1, window_bounds = array<i64: 128, 128>}, {transform_indices = @transform_2, window_bounds = array<i64: 32, 128>}, {transform_indices = @transform_3, window_bounds = array<i64: 8, 128>}, {transform_indices = @transform_4, window_bounds = array<i64: 8, 128>}]} {
    %c0 = arith.constant 0 : index
    %c0_0 = arith.constant 0 : index
    %0 = vector.load %arg1[%c0, %c0_0] : memref<32x128xbf16, #tpu.memory_space<vmem>>, vector<32x128xbf16>
    %c0_1 = arith.constant 0 : index
    %c0_2 = arith.constant 0 : index
    %1 = vector.load %arg2[%c0_1, %c0_2] : memref<128x128xbf16, #tpu.memory_space<vmem>>, vector<128x128xbf16>
    %cst = arith.constant dense<0.000000e+00> : vector<32x128xf32>
    %2 = tpu.matmul %0, %1, %cst {dimension_numbers = #tpu.dot_dimension_numbers<[1], [0], [0], [1], [0, 0, 1, 1], [], []>} : vector<32x128xbf16>, vector<128x128xbf16>, vector<32x128xf32> -> vector<32x128xf32>
    %3 = arith.truncf %2 : vector<32x128xf32> to vector<32x128xbf16>
    %c0_3 = arith.constant 0 : index
    %c0_4 = arith.constant 0 : index
    %4 = vector.load %arg3[%c0_3, %c0_4] : memref<32x128xbf16, #tpu.memory_space<vmem>>, vector<32x128xbf16>
    tpu.vector_store %arg3[%c0_3, %c0_4], %3 {strides = array<i32>} : memref<32x128xbf16, #tpu.memory_space<vmem>>, vector<32x128xbf16>,
    %5 = vector.shape_cast %2 : vector<32x128xf32> to vector<8x4x128xf32>
    %cst_5 = arith.constant dense<0.000000e+00> : vector<8x128xf32>
    %6 = vector.multi_reduction <add>, %5, %cst_5 [1] : vector<8x4x128xf32> to vector<8x128xf32>
    %c0_6 = arith.constant 0 : index
    %c0_7 = arith.constant 0 : index
    %7 = vector.load %arg4[%c0_6, %c0_7] : memref<8x128xf32, #tpu.memory_space<vmem>>, vector<8x128xf32>
    tpu.vector_store %arg4[%c0_6, %c0_7], %6 {strides = array<i32>} : memref<8x128xf32, #tpu.memory_space<vmem>>, vector<8x128xf32>,
    %8 = arith.mulf %5, %5 : vector<8x4x128xf32>
    %cst_8 = arith.constant dense<0.000000e+00> : vector<8x128xf32>
    %9 = vector.multi_reduction <add>, %8, %cst_8 [1] : vector<8x4x128xf32> to vector<8x128xf32>
    %c0_9 = arith.constant 0 : index
    %c0_10 = arith.constant 0 : index
    %10 = vector.load %arg5[%c0_9, %c0_10] : memref<8x128xf32, #tpu.memory_space<vmem>>, vector<8x128xf32>
    tpu.vector_store %arg5[%c0_9, %c0_10], %9 {strides = array<i32>} : memref<8x128xf32, #tpu.memory_space<vmem>>, vector<8x128xf32>,
    return
  }
  func.func @transform_0(%arg0: i32) -> (i32, i32) {
    %c0_i32 = arith.constant 0 : i32
    %c0_i32_0 = arith.constant 0 : i32
    return %arg0, %c0_i32 : i32, i32
  }
  func.func @transform_1(%arg0: i32) -> (i32, i32) {
    %c0_i32 = arith.constant 0 : i32
    %c0_i32_0 = arith.constant 0 : i32
    %c0_i32_1 = arith.constant 0 : i32
    return %c0_i32, %c0_i32_0 : i32, i32
  }
  func.func @transform_2(%arg0: i32) -> (i32, i32) {
    %c0_i32 = arith.constant 0 : i32
    %c0_i32_0 = arith.constant 0 : i32
    return %arg0, %c0_i32 : i32, i32
  }
  func.func @transform_3(%arg0: i32) -> (i32, i32) {
    %c0_i32 = arith.constant 0 : i32
    %c0_i32_0 = arith.constant 0 : i32
    return %arg0, %c0_i32 : i32, i32
  }
  func.func @transform_4(%arg0: i32) -> (i32, i32) {
    %c0_i32 = arith.constant 0 : i32
    %c0_i32_0 = arith.constant 0 : i32
    return %arg0, %c0_i32 : i32, i32
  }
}

module attributes {stable_mosaic.version = 11 : i64} {
  func.func @_bn_lrelu_kernel(%arg0: i32, %arg1: memref<32x128xbf16, #tpu.memory_space<vmem>>, %arg2: memref<1x128xf32, #tpu.memory_space<vmem>>, %arg3: memref<1x128xf32, #tpu.memory_space<vmem>>, %arg4: memref<32x128xbf16, #tpu.memory_space<vmem>>) attributes {dimension_semantics = [#tpu.dimension_semantics<parallel>], iteration_bounds = array<i64: 1>, scalar_prefetch = 0 : i64, scratch_operands = 0 : i64, tpu.core_type = #tpu.core_type<tc>, window_params = [{transform_indices = @transform_0, window_bounds = array<i64: 32, 128>}, {pipeline_mode = #tpu.pipeline_mode<synchronous>, transform_indices = @transform_1, window_bounds = array<i64: 1, 128>}, {pipeline_mode = #tpu.pipeline_mode<synchronous>, transform_indices = @transform_2, window_bounds = array<i64: 1, 128>}, {transform_indices = @transform_3, window_bounds = array<i64: 32, 128>}]} {
    %c0 = arith.constant 0 : index
    %c0_0 = arith.constant 0 : index
    %0 = vector.load %arg1[%c0, %c0_0] : memref<32x128xbf16, #tpu.memory_space<vmem>>, vector<32x128xbf16>
    %1 = arith.extf %0 : vector<32x128xbf16> to vector<32x128xf32>
    %c0_1 = arith.constant 0 : index
    %c0_2 = arith.constant 0 : index
    %2 = vector.load %arg2[%c0_1, %c0_2] : memref<1x128xf32, #tpu.memory_space<vmem>>, vector<1x128xf32>
    %3 = vector.broadcast %2 : vector<1x128xf32> to vector<32x128xf32>
    %4 = arith.mulf %1, %3 : vector<32x128xf32>
    %c0_3 = arith.constant 0 : index
    %c0_4 = arith.constant 0 : index
    %5 = vector.load %arg3[%c0_3, %c0_4] : memref<1x128xf32, #tpu.memory_space<vmem>>, vector<1x128xf32>
    %6 = vector.broadcast %5 : vector<1x128xf32> to vector<32x128xf32>
    %7 = arith.addf %4, %6 : vector<32x128xf32>
    %cst = arith.constant 0.000000e+00 : f32
    %8 = vector.broadcast %cst : f32 to vector<32x128xf32>
    %9 = arith.cmpf ogt, %7, %8 : vector<32x128xf32>
    %cst_5 = arith.constant 2.000000e-01 : f32
    %10 = vector.broadcast %cst_5 : f32 to vector<32x128xf32>
    %11 = arith.mulf %10, %7 : vector<32x128xf32>
    %12 = arith.select %9, %7, %11 : vector<32x128xi1>, vector<32x128xf32>
    %13 = arith.truncf %12 : vector<32x128xf32> to vector<32x128xbf16>
    %c0_6 = arith.constant 0 : index
    %c0_7 = arith.constant 0 : index
    %14 = vector.load %arg4[%c0_6, %c0_7] : memref<32x128xbf16, #tpu.memory_space<vmem>>, vector<32x128xbf16>
    tpu.vector_store %arg4[%c0_6, %c0_7], %13 {strides = array<i32>} : memref<32x128xbf16, #tpu.memory_space<vmem>>, vector<32x128xbf16>,
    return
  }
  func.func @transform_0(%arg0: i32) -> (i32, i32) {
    %c0_i32 = arith.constant 0 : i32
    %c0_i32_0 = arith.constant 0 : i32
    return %arg0, %c0_i32 : i32, i32
  }
  func.func @transform_1(%arg0: i32) -> (i32, i32) {
    %c0_i32 = arith.constant 0 : i32
    %c0_i32_0 = arith.constant 0 : i32
    %c0_i32_1 = arith.constant 0 : i32
    return %c0_i32, %c0_i32_0 : i32, i32
  }
  func.func @transform_2(%arg0: i32) -> (i32, i32) {
    %c0_i32 = arith.constant 0 : i32
    %c0_i32_0 = arith.constant 0 : i32
    %c0_i32_1 = arith.constant 0 : i32
    return %c0_i32, %c0_i32_0 : i32, i32
  }
  func.func @transform_3(%arg0: i32) -> (i32, i32) {
    %c0_i32 = arith.constant 0 : i32
    %c0_i32_0 = arith.constant 0 : i32
    return %arg0, %c0_i32 : i32, i32
  }
}

</mosaic_0001>

<llo_original>
// kernel: dcgan_d_forward.3
$region0: #{dcgan_d_forward.3}
  #allocation0 [shape = 'u32[]', space=smem, size = 0x4, offset = 0x4, fixed_abs, tag = 'smem constant byte address 0x4 - core index']
  #allocation1 [shape = 'u32[72,128]{1,0:T(1,128)}', space=vmem, size = 0x9000, scoped, tag = 'internal scratch']
  %s0 = inlined_call_operand.vmem [shape: bf16[128,64], index: 0, kind: input, shape index: {}]
  %s1 = inlined_call_operand.vmem [shape: bf16[64,128], index: 1, kind: input, shape index: {}]
  %s2 = inlined_call_operand.vmem [shape: bf16[128,128], index: 2, kind: output, shape index: {}]
  %s3 = sld [smem:[#allocation0]]
  $region18: #{dcgan_d_forward.3} parent=0
    _
  %s5 = ssub.s32 1, %s3
  %s6 = scalar_select 0, %s5, %s3
  // Predicated region
  $region2: #{dcgan_d_forward.3} parent=0 // pred_check
    _
  $region3: #{dcgan_d_forward.3} parent=0 // pred_check_branch
    %8 = sbr.rel (0) target = $region5
  $region4: #{dcgan_d_forward.3} parent=0 // pred_region
    _
  $region5: #{dcgan_d_forward.3} parent=0 // pred_fallthru
    _
  // Predicated region
  $region6: #{dcgan_d_forward.3} parent=0 // pred_check
    _
  $region7: #{dcgan_d_forward.3} parent=0 // pred_check_branch
    %10 = sbr.rel (0) target = $region9
  $region8: #{dcgan_d_forward.3} parent=0 // pred_region
    _
  $region9: #{dcgan_d_forward.3} parent=0 // pred_fallthru
    _
  %v12 = vld [vmem:[%s0] sm:$0xf]
  %v13 = vld [vmem:[%s0 + $0x4] sm:$0xf]
  %v14 = vld [vmem:[%s0 + $0x8] sm:$0xf]
  %v15 = vld [vmem:[%s0 + $0xc] sm:$0xf]
  %v16 = vld [vmem:[%s0 + $0x10] sm:$0xf]
  %v17 = vld [vmem:[%s0 + $0x14] sm:$0xf]
  %v18 = vld [vmem:[%s0 + $0x18] sm:$0xf]
  %v19 = vld [vmem:[%s0 + $0x1c] sm:$0xf]
  %v20 = vld [vmem:[%s0 + $0x20] sm:$0xf]
  %v21 = vld [vmem:[%s0 + $0x24] sm:$0xf]
  %v22 = vld [vmem:[%s0 + $0x28] sm:$0xf]
  %v23 = vld [vmem:[%s0 + $0x2c] sm:$0xf]
  %v24 = vld [vmem:[%s0 + $0x30] sm:$0xf]
  %v25 = vld [vmem:[%s0 + $0x34] sm:$0xf]
  %v26 = vld [vmem:[%s0 + $0x38] sm:$0xf]
  %v27 = vld [vmem:[%s0 + $0x3c] sm:$0xf]
  %v28 = vld [vmem:[%s1] sm:$0xf]
  %v29 = vld [vmem:[%s1 + $0x4] sm:$0xf]
  %v30 = vld [vmem:[%s1 + $0x8] sm:$0xf]
  %v31 = vld [vmem:[%s1 + $0xc] sm:$0xf]
  %v32 = vld [vmem:[%s1 + $0x10] sm:$0xf]
  %v33 = vld [vmem:[%s1 + $0x14] sm:$0xf]
  %v34 = vld [vmem:[%s1 + $0x18] sm:$0xf]
  %v35 = vld [vmem:[%s1 + $0x1c] sm:$0xf]
  %v52 = vunpack.c.l.b16 %v12
  %v53 = vunpack.c.l.b16 %v13
  %v54 = vunpack.c.l.b16 %v14
  %v55 = vunpack.c.l.b16 %v15
  %v56 = vunpack.c.l.b16 %v16
  %v57 = vunpack.c.l.b16 %v17
  %v58 = vunpack.c.l.b16 %v18
  %v59 = vunpack.c.l.b16 %v19
  %v60 = vunpack.c.l.b16 %v20
  %v61 = vunpack.c.l.b16 %v21
  %v62 = vunpack.c.l.b16 %v22
  %v63 = vunpack.c.l.b16 %v23
  %v64 = vunpack.c.l.b16 %v24
  %v65 = vunpack.c.l.b16 %v25
  %v66 = vunpack.c.l.b16 %v26
  %v67 = vunpack.c.l.b16 %v27
  %v68 = vpack.c.b16 %v53, %v52
  %v69 = vpack.c.b16 %v55, %v54
  %v70 = vpack.c.b16 %v57, %v56
  %v71 = vpack.c.b16 %v59, %v58
  %v72 = vpack.c.b16 %v61, %v60
  %v73 = vpack.c.b16 %v63, %v62
  %v74 = vpack.c.b16 %v65, %v64
  %v75 = vpack.c.b16 %v67, %v66
  %v84 = vunpack.c.l.b16 %v28
  %v85 = vunpack.c.l.b16 %v29
  %v86 = vunpack.c.l.b16 %v30
  %v87 = vunpack.c.l.b16 %v31
  %v88 = vunpack.c.l.b16 %v32
  %v89 = vunpack.c.l.b16 %v33
  %v90 = vunpack.c.l.b16 %v34
  %v91 = vunpack.c.l.b16 %v35
  %v92 = vpack.c.b16 %v85, %v84
  %v93 = vpack.c.b16 %v87, %v86
  %v94 = vpack.c.b16 %v89, %v88
  %v95 = vpack.c.b16 %v91, %v90
  %vm100 = vcmask 523264
  %v102 = vsel %vm100, %v68, 0
  %v105 = vsel %vm100, %v69, 0
  %v108 = vsel %vm100, %v70, 0
  %v111 = vsel %vm100, %v71, 0
  %v114 = vsel %vm100, %v72, 0
  %v117 = vsel %vm100, %v73, 0
  %v120 = vsel %vm100, %v74, 0
  %v123 = vsel %vm100, %v75, 0
  %125 = vmatpush.bf16.msra.mxu0 0
  %126 = vmatpush.bf16.msra.mxu0 0
  %127 = vmatpush.bf16.msra.mxu0 0
  %128 = vmatpush.bf16.msra.mxu0 0
  %129 = vmatpush.bf16.msra.mxu0 %v95
  %130 = vmatpush.bf16.msra.mxu0 %v94
  %131 = vmatpush.bf16.msra.mxu0 %v93
  %132 = vmatpush.bf16.msra.mxu0 %v92
  %133 = vmatmul.bf16.gmra.mxu0 %v102
  %v134 = vpop.f32.mrf.mxu0
  %v135 = vadd.f32 0.0, %v134
  %v136 = vpop.f32.mrf.mxu0
  %v137 = vadd.f32 0.0, %v136
  %138 = vmatmul.bf16.gmra.mxu0 %v105
  %v139 = vpop.f32.mrf.mxu0
  %v140 = vadd.f32 0.0, %v139
  %v141 = vpop.f32.mrf.mxu0
  %v142 = vadd.f32 0.0, %v141
  %143 = vmatmul.bf16.gmra.mxu0 %v108
  %v144 = vpop.f32.mrf.mxu0
  %v145 = vadd.f32 0.0, %v144
  %v146 = vpop.f32.mrf.mxu0
  %v147 = vadd.f32 0.0, %v146
  %148 = vmatmul.bf16.gmra.mxu0 %v111
  %v149 = vpop.f32.mrf.mxu0
  %v150 = vadd.f32 0.0, %v149
  %v151 = vpop.f32.mrf.mxu0
  %v152 = vadd.f32 0.0, %v151
  %153 = vmatmul.bf16.gmra.mxu0 %v114
  %v154 = vpop.f32.mrf.mxu0
  %v155 = vadd.f32 0.0, %v154
  %v156 = vpop.f32.mrf.mxu0
  %v157 = vadd.f32 0.0, %v156
  %158 = vmatmul.bf16.gmra.mxu0 %v117
  %v159 = vpop.f32.mrf.mxu0
  %v160 = vadd.f32 0.0, %v159
  %v161 = vpop.f32.mrf.mxu0
  %v162 = vadd.f32 0.0, %v161
  %163 = vmatmul.bf16.gmra.mxu0 %v120
  %v164 = vpop.f32.mrf.mxu0
  %v165 = vadd.f32 0.0, %v164
  %v166 = vpop.f32.mrf.mxu0
  %v167 = vadd.f32 0.0, %v166
  %168 = vmatmul.bf16.gmra.mxu0 %v123
  %v169 = vpop.f32.mrf.mxu0
  %v170 = vadd.f32 0.0, %v169
  %v171 = vpop.f32.mrf.mxu0
  %v172 = vadd.f32 0.0, %v171
  %173 = vdwg.mxu0
  %vm174 = vcmp.gt.f32.partialorder %v135, 0.0
  %vm175 = vcmp.gt.f32.partialorder %v137, 0.0
  %vm176 = vcmp.gt.f32.partialorder %v140, 0.0
  %vm177 = vcmp.gt.f32.partialorder %v142, 0.0
  %vm178 = vcmp.gt.f32.partialorder %v145, 0.0
  %vm179 = vcmp.gt.f32.partialorder %v147, 0.0
  %vm180 = vcmp.gt.f32.partialorder %v150, 0.0
  %vm181 = vcmp.gt.f32.partialorder %v152, 0.0
  %vm182 = vcmp.gt.f32.partialorder %v155, 0.0
  %vm183 = vcmp.gt.f32.partialorder %v157, 0.0
  %vm184 = vcmp.gt.f32.partialorder %v160, 0.0
  %vm185 = vcmp.gt.f32.partialorder %v162, 0.0
  %vm186 = vcmp.gt.f32.partialorder %v165, 0.0
  %vm187 = vcmp.gt.f32.partialorder %v167, 0.0
  %vm188 = vcmp.gt.f32.partialorder %v170, 0.0
  %vm189 = vcmp.gt.f32.partialorder %v172, 0.0
  %v190 = vmul.f32 %v135, 0.2
  %v191 = vmul.f32 %v137, 0.2
  %v192 = vmul.f32 %v140, 0.2
  %v193 = vmul.f32 %v142, 0.2
  %v194 = vmul.f32 %v145, 0.2
  %v195 = vmul.f32 %v147, 0.2
  %v196 = vmul.f32 %v150, 0.2
  %v197 = vmul.f32 %v152, 0.2
  %v198 = vmul.f32 %v155, 0.2
  %v199 = vmul.f32 %v157, 0.2
  %v200 = vmul.f32 %v160, 0.2
  %v201 = vmul.f32 %v162, 0.2
  %v202 = vmul.f32 %v165, 0.2
  %v203 = vmul.f32 %v167, 0.2
  %v204 = vmul.f32 %v170, 0.2
  %v205 = vmul.f32 %v172, 0.2
  %v206 = vsel %vm174, %v135, %v190
  %v207 = vsel %vm175, %v137, %v191
  %v208 = vsel %vm176, %v140, %v192
  %v209 = vsel %vm177, %v142, %v193
  %v210 = vsel %vm178, %v145, %v194
  %v211 = vsel %vm179, %v147, %v195
  %v212 = vsel %vm180, %v150, %v196
  %v213 = vsel %vm181, %v152, %v197
  %v214 = vsel %vm182, %v155, %v198
  %v215 = vsel %vm183, %v157, %v199
  %v216 = vsel %vm184, %v160, %v200
  %v217 = vsel %vm185, %v162, %v201
  %v218 = vsel %vm186, %v165, %v202
  %v219 = vsel %vm187, %v167, %v203
  %v220 = vsel %vm188, %v170, %v204
  %v221 = vsel %vm189, %v172, %v205
  %v222 = vpack.c.bf16 %v206, %v206
  %v223 = vpack.c.bf16 %v207, %v207
  %v224 = vpack.c.bf16 %v208, %v208
  %v225 = vpack.c.bf16 %v209, %v209
  %v226 = vpack.c.bf16 %v210, %v210
  %v227 = vpack.c.bf16 %v211, %v211
  %v228 = vpack.c.bf16 %v212, %v212
  %v229 = vpack.c.bf16 %v213, %v213
  %v230 = vpack.c.bf16 %v214, %v214
  %v231 = vpack.c.bf16 %v215, %v215
  %v232 = vpack.c.bf16 %v216, %v216
  %v233 = vpack.c.bf16 %v217, %v217
  %v234 = vpack.c.bf16 %v218, %v218
  %v235 = vpack.c.bf16 %v219, %v219
  %v236 = vpack.c.bf16 %v220, %v220
  %v237 = vpack.c.bf16 %v221, %v221
  %238 = vst [vmem:[%s2] sm:$0xf] %v222
  %239 = vst [vmem:[%s2 + $0x4] sm:$0xf] %v223
  %240 = vst [vmem:[%s2 + $0x8] sm:$0xf] %v224
  %241 = vst [vmem:[%s2 + $0xc] sm:$0xf] %v225
  %242 = vst [vmem:[%s2 + $0x10] sm:$0xf] %v226
  %243 = vst [vmem:[%s2 + $0x14] sm:$0xf] %v227
  %244 = vst [vmem:[%s2 + $0x18] sm:$0xf] %v228
  %245 = vst [vmem:[%s2 + $0x1c] sm:$0xf] %v229
  %246 = vst [vmem:[%s2 + $0x20] sm:$0xf] %v230
  %247 = vst [vmem:[%s2 + $0x24] sm:$0xf] %v231
  %248 = vst [vmem:[%s2 + $0x28] sm:$0xf] %v232
  %249 = vst [vmem:[%s2 + $0x2c] sm:$0xf] %v233
  %250 = vst [vmem:[%s2 + $0x30] sm:$0xf] %v234
  %251 = vst [vmem:[%s2 + $0x34] sm:$0xf] %v235
  %252 = vst [vmem:[%s2 + $0x38] sm:$0xf] %v236
  %253 = vst [vmem:[%s2 + $0x3c] sm:$0xf] %v237
  // Predicated region
  $region10: #{dcgan_d_forward.3} parent=0 // pred_check
    _
  $region11: #{dcgan_d_forward.3} parent=0 // pred_check_branch
    %255 = sbr.rel (0) target = $region13
  $region12: #{dcgan_d_forward.3} parent=0 // pred_region
    _
  $region13: #{dcgan_d_forward.3} parent=0 // pred_fallthru
    _
  // Predicated region
  $region14: #{dcgan_d_forward.3} parent=0 // pred_check
    _
  $region15: #{dcgan_d_forward.3} parent=0 // pred_check_branch
    %257 = sbr.rel (0) target = $region17
  $region16: #{dcgan_d_forward.3} parent=0 // pred_region
    _
  $region17: #{dcgan_d_forward.3} parent=0 // pred_fallthru
    _

// kernel: dcgan_d_forward.4
$region0: #{dcgan_d_forward.4}
  #allocation0 [shape = 'u32[]', space=smem, size = 0x4, offset = 0x4, fixed_abs, tag = 'smem constant byte address 0x4 - core index']
  #allocation1 [shape = 'u32[72,128]{1,0:T(1,128)}', space=vmem, size = 0x9000, scoped, tag = 'internal scratch']
  %s0 = inlined_call_operand.vmem [shape: bf16[32,128], index: 0, kind: input, shape index: {}]
  %s1 = inlined_call_operand.vmem [shape: bf16[128,128], index: 1, kind: input, shape index: {}]
  %s2 = inlined_call_operand.vmem [shape: bf16[32,128], index: 2, kind: output, shape index: {0}]
  %s3 = inlined_call_operand.vmem [shape: f32[8,128], index: 3, kind: output, shape index: {1}]
  %s4 = inlined_call_operand.vmem [shape: f32[8,128], index: 4, kind: output, shape index: {2}]
  %5 = xla_tuple %s2, %s3, %s4
  %s6 = sld [smem:[#allocation0]]
  $region34: #{dcgan_d_forward.4} parent=0
    _
  %s8 = ssub.s32 1, %s6
  %s9 = scalar_select 0, %s8, %s6
  // Predicated region
  $region2: #{dcgan_d_forward.4} parent=0 // pred_check
    _
  $region3: #{dcgan_d_forward.4} parent=0 // pred_check_branch
    %11 = sbr.rel (0) target = $region5
  $region4: #{dcgan_d_forward.4} parent=0 // pred_region
    _
  $region5: #{dcgan_d_forward.4} parent=0 // pred_fallthru
    _
  // Predicated region
  $region6: #{dcgan_d_forward.4} parent=0 // pred_check
    _
  $region7: #{dcgan_d_forward.4} parent=0 // pred_check_branch
    %13 = sbr.rel (0) target = $region9
  $region8: #{dcgan_d_forward.4} parent=0 // pred_region
    _
  $region9: #{dcgan_d_forward.4} parent=0 // pred_fallthru
    _
  %v14 = vld [vmem:[%s0] sm:$0xf]
  %v15 = vld [vmem:[%s0 + $0x4] sm:$0xf]
  %v16 = vld [vmem:[%s0 + $0x8] sm:$0xf]
  %v17 = vld [vmem:[%s0 + $0xc] sm:$0xf]
  %v18 = vld [vmem:[%s1] sm:$0xf]
  %v19 = vld [vmem:[%s1 + $0x4] sm:$0xf]
  %v20 = vld [vmem:[%s1 + $0x8] sm:$0xf]
  %v21 = vld [vmem:[%s1 + $0xc] sm:$0xf]
  %v22 = vld [vmem:[%s1 + $0x10] sm:$0xf]
  %v23 = vld [vmem:[%s1 + $0x14] sm:$0xf]
  %v24 = vld [vmem:[%s1 + $0x18] sm:$0xf]
  %v25 = vld [vmem:[%s1 + $0x1c] sm:$0xf]
  %v26 = vld [vmem:[%s1 + $0x20] sm:$0xf]
  %v27 = vld [vmem:[%s1 + $0x24] sm:$0xf]
  %v28 = vld [vmem:[%s1 + $0x28] sm:$0xf]
  %v29 = vld [vmem:[%s1 + $0x2c] sm:$0xf]
  %v30 = vld [vmem:[%s1 + $0x30] sm:$0xf]
  %v31 = vld [vmem:[%s1 + $0x34] sm:$0xf]
  %v32 = vld [vmem:[%s1 + $0x38] sm:$0xf]
  %v33 = vld [vmem:[%s1 + $0x3c] sm:$0xf]
  %v38 = vunpack.c.l.b16 %v14
  %v39 = vunpack.c.l.b16 %v15
  %v40 = vunpack.c.l.b16 %v16
  %v41 = vunpack.c.l.b16 %v17
  %v42 = vpack.c.b16 %v39, %v38
  %v43 = vpack.c.b16 %v41, %v40
  %v62 = vunpack.c.l.b16 %v18
  %v63 = vunpack.c.l.b16 %v19
  %v64 = vunpack.c.l.b16 %v20
  %v65 = vunpack.c.l.b16 %v21
  %v66 = vunpack.c.l.b16 %v22
  %v67 = vunpack.c.l.b16 %v23
  %v68 = vunpack.c.l.b16 %v24
  %v69 = vunpack.c.l.b16 %v25
  %v70 = vunpack.c.l.b16 %v26
  %v71 = vunpack.c.l.b16 %v27
  %v72 = vunpack.c.l.b16 %v28
  %v73 = vunpack.c.l.b16 %v29
  %v74 = vunpack.c.l.b16 %v30
  %v75 = vunpack.c.l.b16 %v31
  %v76 = vunpack.c.l.b16 %v32
  %v77 = vunpack.c.l.b16 %v33
  %v78 = vpack.c.b16 %v63, %v62
  %v79 = vpack.c.b16 %v65, %v64
  %v80 = vpack.c.b16 %v67, %v66
  %v81 = vpack.c.b16 %v69, %v68
  %v82 = vpack.c.b16 %v71, %v70
  %v83 = vpack.c.b16 %v73, %v72
  %v84 = vpack.c.b16 %v75, %v74
  %v85 = vpack.c.b16 %v77, %v76
  %94 = vmatpush.bf16.msra.mxu0 %v85
  %95 = vmatpush.bf16.msra.mxu0 %v84
  %96 = vmatpush.bf16.msra.mxu0 %v83
  %97 = vmatpush.bf16.msra.mxu0 %v82
  %98 = vmatpush.bf16.msra.mxu0 %v81
  %99 = vmatpush.bf16.msra.mxu0 %v80
  %100 = vmatpush.bf16.msra.mxu0 %v79
  %101 = vmatpush.bf16.msra.mxu0 %v78
  %102 = vmatmul.bf16.gmra.mxu0 %v42
  %v103 = vpop.f32.mrf.mxu0
  %v104 = vadd.f32 0.0, %v103
  %v105 = vpop.f32.mrf.mxu0
  %v106 = vadd.f32 0.0, %v105
  %107 = vmatmul.bf16.gmra.mxu0 %v43
  %v108 = vpop.f32.mrf.mxu0
  %v109 = vadd.f32 0.0, %v108
  %v110 = vpop.f32.mrf.mxu0
  %v111 = vadd.f32 0.0, %v110
  %112 = vdwg.mxu0
  %v113 = vpack.c.bf16 %v104, %v104
  %v114 = vpack.c.bf16 %v106, %v106
  %v115 = vpack.c.bf16 %v109, %v109
  %v116 = vpack.c.bf16 %v111, %v111
  %117 = vst [vmem:[%s2] sm:$0xf] %v113
  %118 = vst [vmem:[%s2 + $0x4] sm:$0xf] %v114
  %119 = vst [vmem:[%s2 + $0x8] sm:$0xf] %v115
  %120 = vst [vmem:[%s2 + $0xc] sm:$0xf] %v116
  %v125 = vrot.slane %v104, 4
  %v126 = vrot.slane %v106, 4
  %v127 = vrot.slane %v109, 4
  %v128 = vrot.slane %v111, 4
  %vm133 = vcmask 1043456
  %v134 = vsel %vm133, %v104, 0.0
  %v135 = vrot.slane %v134, 4
  %v136 = vadd.f32 %v134, %v135
  %v137 = vrot.slane %v136, 2
  %v138 = vadd.f32 %v136, %v137
  %v139 = vrot.slane %v138, 1
  %v140 = vadd.f32 %v138, %v139
  %v141 = vsel %vm133, %v125, 0.0
  %v142 = vrot.slane %v141, 4
  %v143 = vadd.f32 %v141, %v142
  %v144 = vrot.slane %v143, 2
  %v145 = vadd.f32 %v143, %v144
  %v146 = vrot.slane %v145, 1
  %v147 = vadd.f32 %v145, %v146
  %v148 = vsel %vm133, %v106, 0.0
  %v149 = vrot.slane %v148, 4
  %v150 = vadd.f32 %v148, %v149
  %v151 = vrot.slane %v150, 2
  %v152 = vadd.f32 %v150, %v151
  %v153 = vrot.slane %v152, 1
  %v154 = vadd.f32 %v152, %v153
  %v155 = vsel %vm133, %v126, 0.0
  %v156 = vrot.slane %v155, 4
  %v157 = vadd.f32 %v155, %v156
  %v158 = vrot.slane %v157, 2
  %v159 = vadd.f32 %v157, %v158
  %v160 = vrot.slane %v159, 1
  %v161 = vadd.f32 %v159, %v160
  %v162 = vsel %vm133, %v109, 0.0
  %v163 = vrot.slane %v162, 4
  %v164 = vadd.f32 %v162, %v163
  %v165 = vrot.slane %v164, 2
  %v166 = vadd.f32 %v164, %v165
  %v167 = vrot.slane %v166, 1
  %v168 = vadd.f32 %v166, %v167
  %v169 = vsel %vm133, %v127, 0.0
  %v170 = vrot.slane %v169, 4
  %v171 = vadd.f32 %v169, %v170
  %v172 = vrot.slane %v171, 2
  %v173 = vadd.f32 %v171, %v172
  %v174 = vrot.slane %v173, 1
  %v175 = vadd.f32 %v173, %v174
  %v176 = vsel %vm133, %v111, 0.0
  %v177 = vrot.slane %v176, 4
  %v178 = vadd.f32 %v176, %v177
  %v179 = vrot.slane %v178, 2
  %v180 = vadd.f32 %v178, %v179
  %v181 = vrot.slane %v180, 1
  %v182 = vadd.f32 %v180, %v181
  %v183 = vsel %vm133, %v128, 0.0
  %v184 = vrot.slane %v183, 4
  %v185 = vadd.f32 %v183, %v184
  %v186 = vrot.slane %v185, 2
  %v187 = vadd.f32 %v185, %v186
  %v188 = vrot.slane %v187, 1
  %v189 = vadd.f32 %v187, %v188
  %vm198 = vcmask 1041409
  %v199 = vsel %vm198, %v147, %v140
  %vm200 = vcmask 1042434
  %v201 = vsel %vm200, %v154, %v199
  %vm202 = vcmask 1043459
  %v203 = vsel %vm202, %v161, %v201
  %vm204 = vcmask 1044484
  %v205 = vsel %vm204, %v168, %v203
  %vm206 = vcmask 1045509
  %v207 = vsel %vm206, %v175, %v205
  %vm208 = vcmask 1046534
  %v209 = vsel %vm208, %v182, %v207
  %vm210 = vcmask 1047559
  %v211 = vsel %vm210, %v189, %v209
  %213 = vst [vmem:[%s3] sm:$0xff] %v211
  %v214 = vmul.f32 %v104, %v104
  %v215 = vmul.f32 %v125, %v125
  %v216 = vmul.f32 %v106, %v106
  %v217 = vmul.f32 %v126, %v126
  %v218 = vmul.f32 %v109, %v109
  %v219 = vmul.f32 %v127, %v127
  %v220 = vmul.f32 %v111, %v111
  %v221 = vmul.f32 %v128, %v128
  %v222 = vsel %vm133, %v214, 0.0
  %v223 = vrot.slane %v222, 4
  %v224 = vadd.f32 %v222, %v223
  %v225 = vrot.slane %v224, 2
  %v226 = vadd.f32 %v224, %v225
  %v227 = vrot.slane %v226, 1
  %v228 = vadd.f32 %v226, %v227
  %v229 = vsel %vm133, %v215, 0.0
  %v230 = vrot.slane %v229, 4
  %v231 = vadd.f32 %v229, %v230
  %v232 = vrot.slane %v231, 2
  %v233 = vadd.f32 %v231, %v232
  %v234 = vrot.slane %v233, 1
  %v235 = vadd.f32 %v233, %v234
  %v236 = vsel %vm133, %v216, 0.0
  %v237 = vrot.slane %v236, 4
  %v238 = vadd.f32 %v236, %v237
  %v239 = vrot.slane %v238, 2
  %v240 = vadd.f32 %v238, %v239
  %v241 = vrot.slane %v240, 1
  %v242 = vadd.f32 %v240, %v241
  %v243 = vsel %vm133, %v217, 0.0
  %v244 = vrot.slane %v243, 4
  %v245 = vadd.f32 %v243, %v244
  %v246 = vrot.slane %v245, 2
  %v247 = vadd.f32 %v245, %v246
  %v248 = vrot.slane %v247, 1
  %v249 = vadd.f32 %v247, %v248
  %v250 = vsel %vm133, %v218, 0.0
  %v251 = vrot.slane %v250, 4
  %v252 = vadd.f32 %v250, %v251
  %v253 = vrot.slane %v252, 2
  %v254 = vadd.f32 %v252, %v253
  %v255 = vrot.slane %v254, 1
  %v256 = vadd.f32 %v254, %v255
  %v257 = vsel %vm133, %v219, 0.0
  %v258 = vrot.slane %v257, 4
  %v259 = vadd.f32 %v257, %v258
  %v260 = vrot.slane %v259, 2
  %v261 = vadd.f32 %v259, %v260
  %v262 = vrot.slane %v261, 1
  %v263 = vadd.f32 %v261, %v262
  %v264 = vsel %vm133, %v220, 0.0
  %v265 = vrot.slane %v264, 4
  %v266 = vadd.f32 %v264, %v265
  %v267 = vrot.slane %v266, 2
  %v268 = vadd.f32 %v266, %v267
  %v269 = vrot.slane %v268, 1
  %v270 = vadd.f32 %v268, %v269
  %v271 = vsel %vm133, %v221, 0.0
  %v272 = vrot.slane %v271, 4
  %v273 = vadd.f32 %v271, %v272
  %v274 = vrot.slane %v273, 2
  %v275 = vadd.f32 %v273, %v274
  %v276 = vrot.slane %v275, 1
  %v277 = vadd.f32 %v275, %v276
  %v286 = vsel %vm198, %v235, %v228
  %v287 = vsel %vm200, %v242, %v286
  %v288 = vsel %vm202, %v249, %v287
  %v289 = vsel %vm204, %v256, %v288
  %v290 = vsel %vm206, %v263, %v289
  %v291 = vsel %vm208, %v270, %v290
  %v292 = vsel %vm210, %v277, %v291
  %294 = vst [vmem:[%s4] sm:$0xff] %v292
  // Predicated region
  $region10: #{dcgan_d_forward.4} parent=0 // pred_check
    _
  $region11: #{dcgan_d_forward.4} parent=0 // pred_check_branch
    %296 = sbr.rel (0) target = $region13
  $region12: #{dcgan_d_forward.4} parent=0 // pred_region
    _
  $region13: #{dcgan_d_forward.4} parent=0 // pred_fallthru
    _
  // Predicated region
  $region14: #{dcgan_d_forward.4} parent=0 // pred_check
    _
  $region15: #{dcgan_d_forward.4} parent=0 // pred_check_branch
    %298 = sbr.rel (0) target = $region17
  $region16: #{dcgan_d_forward.4} parent=0 // pred_region
    _
  $region17: #{dcgan_d_forward.4} parent=0 // pred_fallthru
    _
  // Predicated region
  $region18: #{dcgan_d_forward.4} parent=0 // pred_check
    _
  $region19: #{dcgan_d_forward.4} parent=0 // pred_check_branch
    %300 = sbr.rel (0) target = $region21
  $region20: #{dcgan_d_forward.4} parent=0 // pred_region
    _
  $region21: #{dcgan_d_forward.4} parent=0 // pred_fallthru
    _
  // Predicated region
  $region22: #{dcgan_d_forward.4} parent=0 // pred_check
    _
  $region23: #{dcgan_d_forward.4} parent=0 // pred_check_branch
    %302 = sbr.rel (0) target = $region25
  $region24: #{dcgan_d_forward.4} parent=0 // pred_region
    _
  $region25: #{dcgan_d_forward.4} parent=0 // pred_fallthru
    _
  // Predicated region
  $region26: #{dcgan_d_forward.4} parent=0 // pred_check
    _
  $region27: #{dcgan_d_forward.4} parent=0 // pred_check_branch
    %304 = sbr.rel (0) target = $region29
  $region28: #{dcgan_d_forward.4} parent=0 // pred_region
    _
  $region29: #{dcgan_d_forward.4} parent=0 // pred_fallthru
    _
  // Predicated region
  $region30: #{dcgan_d_forward.4} parent=0 // pred_check
    _
  $region31: #{dcgan_d_forward.4} parent=0 // pred_check_branch
    %306 = sbr.rel (0) target = $region33
  $region32: #{dcgan_d_forward.4} parent=0 // pred_region
    _
  $region33: #{dcgan_d_forward.4} parent=0 // pred_fallthru
    _

// kernel: dcgan_d_forward.5
$region0: #{dcgan_d_forward.5}
  #allocation0 [shape = 'u32[]', space=smem, size = 0x4, offset = 0x4, fixed_abs, tag = 'smem constant byte address 0x4 - core index']
  #allocation1 [shape = 'u32[72,128]{1,0:T(1,128)}', space=vmem, size = 0x9000, scoped, tag = 'internal scratch']
  %s0 = inlined_call_operand.vmem [shape: bf16[32,128], index: 0, kind: input, shape index: {}]
  %s1 = inlined_call_operand.vmem [shape: f32[1,128], index: 1, kind: input, shape index: {}]
  %s2 = inlined_call_operand.vmem [shape: f32[1,128], index: 2, kind: input, shape index: {}]
  %s3 = inlined_call_operand.vmem [shape: bf16[32,128], index: 3, kind: output, shape index: {}]
  %s4 = sld [smem:[#allocation0]]
  $region22: #{dcgan_d_forward.5} parent=0
    _
  %s6 = ssub.s32 1, %s4
  %s7 = scalar_select 0, %s6, %s4
  // Predicated region
  $region2: #{dcgan_d_forward.5} parent=0 // pred_check
    _
  $region3: #{dcgan_d_forward.5} parent=0 // pred_check_branch
    %9 = sbr.rel (0) target = $region5
  $region4: #{dcgan_d_forward.5} parent=0 // pred_region
    _
  $region5: #{dcgan_d_forward.5} parent=0 // pred_fallthru
    _
  // Predicated region
  $region6: #{dcgan_d_forward.5} parent=0 // pred_check
    _
  $region7: #{dcgan_d_forward.5} parent=0 // pred_check_branch
    %11 = sbr.rel (0) target = $region9
  $region8: #{dcgan_d_forward.5} parent=0 // pred_region
    _
  $region9: #{dcgan_d_forward.5} parent=0 // pred_fallthru
    _
  // Predicated region
  $region10: #{dcgan_d_forward.5} parent=0 // pred_check
    _
  $region11: #{dcgan_d_forward.5} parent=0 // pred_check_branch
    %13 = sbr.rel (0) target = $region13
  $region12: #{dcgan_d_forward.5} parent=0 // pred_region
    _
  $region13: #{dcgan_d_forward.5} parent=0 // pred_fallthru
    _
  %v14 = vld [vmem:[%s0] sm:$0xf]
  %v15 = vld [vmem:[%s0 + $0x4] sm:$0xf]
  %v16 = vld [vmem:[%s0 + $0x8] sm:$0xf]
  %v17 = vld [vmem:[%s0 + $0xc] sm:$0xf]
  %v18 = vunpack.c.l.bf16 %v14
  %v19 = vunpack.c.l.bf16 %v15
  %v20 = vunpack.c.l.bf16 %v16
  %v21 = vunpack.c.l.bf16 %v17
  %v22 = vld [vmem:[%s1] sm:$0x1]
  %v24 = vperm.slane %v22, 0
  %v26 = vmul.f32 %v18, %v24
  %v27 = vmul.f32 %v19, %v24
  %v28 = vmul.f32 %v20, %v24
  %v29 = vmul.f32 %v21, %v24
  %v30 = vld [vmem:[%s2] sm:$0x1]
  %v32 = vperm.slane %v30, 0
  %v34 = vadd.f32 %v26, %v32
  %v35 = vadd.f32 %v27, %v32
  %v36 = vadd.f32 %v28, %v32
  %v37 = vadd.f32 %v29, %v32
  %vm38 = vcmp.gt.f32.partialorder %v34, 0.0
  %vm39 = vcmp.gt.f32.partialorder %v35, 0.0
  %vm40 = vcmp.gt.f32.partialorder %v36, 0.0
  %vm41 = vcmp.gt.f32.partialorder %v37, 0.0
  %v42 = vmul.f32 %v34, 0.2
  %v43 = vmul.f32 %v35, 0.2
  %v44 = vmul.f32 %v36, 0.2
  %v45 = vmul.f32 %v37, 0.2
  %v46 = vsel %vm38, %v34, %v42
  %v47 = vsel %vm39, %v35, %v43
  %v48 = vsel %vm40, %v36, %v44
  %v49 = vsel %vm41, %v37, %v45
  %v50 = vpack.c.bf16 %v46, %v46
  %v51 = vpack.c.bf16 %v47, %v47
  %v52 = vpack.c.bf16 %v48, %v48
  %v53 = vpack.c.bf16 %v49, %v49
  %54 = vst [vmem:[%s3] sm:$0xf] %v50
  %55 = vst [vmem:[%s3 + $0x4] sm:$0xf] %v51
  %56 = vst [vmem:[%s3 + $0x8] sm:$0xf] %v52
  %57 = vst [vmem:[%s3 + $0xc] sm:$0xf] %v53
  // Predicated region
  $region14: #{dcgan_d_forward.5} parent=0 // pred_check
    _
  $region15: #{dcgan_d_forward.5} parent=0 // pred_check_branch
    %59 = sbr.rel (0) target = $region17
  $region16: #{dcgan_d_forward.5} parent=0 // pred_region
    _
  $region17: #{dcgan_d_forward.5} parent=0 // pred_fallthru
    _
  // Predicated region
  $region18: #{dcgan_d_forward.5} parent=0 // pred_check
    _
  $region19: #{dcgan_d_forward.5} parent=0 // pred_check_branch
    %61 = sbr.rel (0) target = $region21
  $region20: #{dcgan_d_forward.5} parent=0 // pred_region
    _
  $region21: #{dcgan_d_forward.5} parent=0 // pred_fallthru
    _

</llo_original>
